<compile_context>
chip_gen: v7x
topology: tpu7x:2x2x1
jax: 0.10.0
libtpu: 0.0.40
codegen_flags: <defaults>
</compile_context>

<pallas_src>
import functools

import jax
import jax.numpy as jnp
from jax import lax
from jax.experimental import pallas as pl
from jax.experimental.pallas import tpu as pltpu


def _rmsnorm_kernel(x_ref, w_ref, o_ref, *, eps: float, inv_h: float):
    # Hot path: square (VPU), lane-reduce (XLU), rsqrt (EUP), scale (VPU).
    x_in = x_ref[...]
    x = x_in.astype(jnp.float32)                           # x = x.float()
    ssq = jnp.sum(x * x, axis=-1, keepdims=True)           # sum of squares
    x = x * lax.rsqrt(ssq * inv_h + eps)                   # x * rsqrt(mean + eps)
    x = x.astype(x_in.dtype)                               # x.to(dtype)
    o_ref[...] = (w_ref[...] * x).astype(o_ref.dtype)      # weight * x


def _tpu_hw():
    """Best-effort (vmem_capacity_bytes, tensorcores_per_chip)."""
    vmem_cap = 64 << 20   # conservative fallback = v7x per-TC VMEM
    num_cores = 1         # v5e / v6e default; only the shrink heuristic uses it
    try:
        info = pltpu.get_tpu_info()
        vmem_cap = int(getattr(info, "vmem_capacity_bytes", vmem_cap))
        for name in ("num_cores", "num_tensorcores", "tensorcore_count",
                     "cores_per_chip"):
            v = getattr(info, name, None)
            if v:
                num_cores = int(v)
                break
    except Exception:
        pass
    return vmem_cap, num_cores


def _round_down(v: int, m: int) -> int:
    return max(m, (v // m) * m)


def _select_row_tile(rows: int, hidden: int, in_bytes: int, out_bytes: int,
                     sublane: int, vmem_cap: int, num_cores: int) -> int:
    # Budget ~half of physical VMEM (leaves >= ~32 MiB headroom on v7x for
    # Mosaic temporaries).  Per-row cost counts the double-buffered input and
    # output blocks PLUS the single-buffered f32 temporaries inside the kernel
    # (upcast x and x*x), which the previous version ignored.
    budget = vmem_cap // 2
    per_row = hidden * (2 * in_bytes + 2 * out_bytes + 8)
    max_rows_by_vmem = max(sublane, budget // max(per_row, 1))

    # Target tile: 512 rows for f32, 1024 for bf16/f16, 2048 for 1-byte dtypes.
    target = {4: 512, 2: 1024, 1: 2048}.get(in_bytes, 512)

    rows_rounded = pl.cdiv(rows, sublane) * sublane
    row_tile = _round_down(min(target, max_rows_by_vmem, rows_rounded), sublane)

    # Only on multi-TC chips (v7x): keep enough grid steps that the "parallel"
    # row axis can shard across TensorCores.  On single-TC chips the grid is a
    # serial loop and shrinking the tile only adds ~0.35 us/step overhead.
    if num_cores >= 2:
        min_steps = 2 * num_cores
        while (row_tile > sublane and pl.cdiv(rows, row_tile) < min_steps
               and rows > min_steps * sublane):
            row_tile = _round_down(row_tile // 2, sublane)
    return row_tile


def _rmsnorm_xla(x: jax.Array, weight: jax.Array, eps: float) -> jax.Array:
    dtype = x.dtype
    xf = x.astype(jnp.float32)
    var = jnp.mean(xf * xf, axis=-1, keepdims=True)
    xf = xf * lax.rsqrt(var + eps)
    return weight * xf.astype(dtype)


def rmsnorm(x: jax.Array, weight: jax.Array, eps: float = 1e-6, *,
            row_tile: int | None = None,
            cast_weight_to_x_dtype: bool = False,
            min_pallas_hidden: int = 128) -> jax.Array:
    """RMSNorm over the last axis of `x`, matching the PyTorch module."""
    orig_shape = x.shape
    hidden = orig_shape[-1]

    if cast_weight_to_x_dtype:
        # Opt-in: keeps output in x.dtype (halves writeback for bf16 act +
        # f32 weight).  Deviates from strict PyTorch promotion, hence opt-in.
        weight = weight.astype(x.dtype)

    # Lane-sparse hidden: a Pallas tile would leave most of every vreg / DMA
    # unused and lower to masked partial stores; plain XLA is at least as good.
    if hidden < min_pallas_hidden:
        return _rmsnorm_xla(x, weight, eps)

    rows = 1
    for d in orig_shape[:-1]:
        rows *= d
    x2 = x.reshape(rows, hidden)
    w2 = weight.reshape(1, hidden)

    # Output dtype follows PyTorch promotion of (weight.dtype * x.dtype).
    out_dtype = jnp.promote_types(weight.dtype, x.dtype)

    in_bytes = jnp.dtype(x.dtype).itemsize
    out_bytes = jnp.dtype(out_dtype).itemsize
    w_bytes = jnp.dtype(weight.dtype).itemsize
    sublane = {4: 8, 2: 16, 1: 32}.get(in_bytes, 8)
    vmem_cap, num_cores = _tpu_hw()

    if row_tile is None:
        row_tile = _select_row_tile(rows, hidden, in_bytes, out_bytes,
                                    sublane, vmem_cap, num_cores)

    # Ragged tail handled by the non-divisible grid: the last block's OOB reads
    # are padded with undefined data and its OOB writes are dropped.  Rows are
    # independent, so garbage tail rows cannot contaminate valid output rows.
    num_blocks = pl.cdiv(rows, row_tile)

    # Scoped-VMEM limit: double-buffered in+out blocks + f32 temporaries + weight.
    needed = (2 * row_tile * hidden * (in_bytes + out_bytes)
              + 2 * row_tile * hidden * 4
              + 2 * hidden * w_bytes)
    vmem_limit = min(max(needed + (4 << 20), 32 << 20), vmem_cap)

    cost = pl.CostEstimate(
        flops=6 * rows * hidden,
        transcendentals=rows,
        bytes_accessed=rows * hidden * (in_bytes + out_bytes) + hidden * w_bytes)

    # NOTE: for best store bandwidth `hidden` should be a multiple of 128
    # (lane-dense output). Non-multiples still compile (block == full dim) but
    # lower to masked partial stores.
    out = pl.pallas_call(
        functools.partial(_rmsnorm_kernel, eps=eps, inv_h=1.0 / hidden),
        out_shape=jax.ShapeDtypeStruct((rows, hidden), out_dtype),
        grid_spec=pltpu.PrefetchScalarGridSpec(
            num_scalar_prefetch=0,
            grid=(num_blocks,),
            in_specs=[
                pl.BlockSpec((row_tile, hidden), lambda i: (i, 0)),
                pl.BlockSpec((1, hidden), lambda i: (0, 0)),
            ],
            out_specs=pl.BlockSpec((row_tile, hidden), lambda i: (i, 0)),
        ),
        # "parallel" lets the row axis shard across TensorCores on v7x; on
        # single-TC chips it is a no-op and the grid runs as a serial loop.
        compiler_params=pltpu.CompilerParams(
            dimension_semantics=("parallel",),
            vmem_limit_bytes=int(vmem_limit)),
        cost_estimate=cost,
    )(x2, w2)

    return out.reshape(orig_shape[:-1] + (hidden,))


if __name__ == "__main__":
    key = jax.random.PRNGKey(0)
    k1, k2, k3 = jax.random.split(key, 3)

    # Main demo: small, lane-dense shapes. Module __init__ sets weight = ones.
    batch, seq, hidden = 2, 8, 256
    weight = jnp.ones((hidden,), dtype=jnp.float32)
    x = jax.random.normal(k1, (batch, seq, hidden), dtype=jnp.float32)

    out = jax.block_until_ready(rmsnorm(x, weight, eps=1e-6))
    ref = _rmsnorm_xla(x, weight, 1e-6)
    assert out.shape == ref.shape and out.dtype == ref.dtype
    assert jnp.allclose(out, ref, atol=1e-5, rtol=1e-5), "f32 mismatch vs reference"

    # Ragged row count + bf16: exercises the non-divisible grid tail (no pad/slice).
    xb = jax.random.normal(k2, (3, 37, 256)).astype(jnp.bfloat16)
    wb = jnp.ones((256,), dtype=jnp.bfloat16)
    outb = jax.block_until_ready(rmsnorm(xb, wb))
    refb = _rmsnorm_xla(xb, wb, 1e-6)
    assert outb.shape == refb.shape and outb.dtype == refb.dtype
    assert jnp.allclose(outb.astype(jnp.float32), refb.astype(jnp.float32),
                        atol=2e-2, rtol=2e-2), "bf16 mismatch vs reference"

    # Tiny hidden (32): default path falls back to XLA; also force the Pallas
    # path (masked stores) to confirm correctness there too.
    xs = jax.random.normal(k3, (2, 8, 32), dtype=jnp.float32)
    ws = jnp.ones((32,), dtype=jnp.float32)
    outs_xla = jax.block_until_ready(rmsnorm(xs, ws))
    outs_pal = jax.block_until_ready(rmsnorm(xs, ws, min_pallas_hidden=0))
    refs = _rmsnorm_xla(xs, ws, 1e-6)
    assert jnp.allclose(outs_xla, refs, atol=1e-5, rtol=1e-5), "xla-fallback mismatch"
    assert jnp.allclose(outs_pal, refs, atol=1e-5, rtol=1e-5), "tiny-hidden kernel mismatch"

    print("KERNEL_OK")
</pallas_src>

<mosaic_0001>
module attributes {stable_mosaic.version = 11 : i64} {
  func.func @_rmsnorm_kernel(%arg0: i32, %arg1: memref<16x256xf32, #tpu.memory_space<vmem>>, %arg2: memref<1x256xf32, #tpu.memory_space<vmem>>, %arg3: memref<16x256xf32, #tpu.memory_space<vmem>>) attributes {dimension_semantics = [#tpu.dimension_semantics<parallel>], iteration_bounds = array<i64: 1>, scalar_prefetch = 0 : i64, scratch_operands = 0 : i64, tpu.core_type = #tpu.core_type<tc>, window_params = [{transform_indices = @transform_0, window_bounds = array<i64: 16, 256>}, {pipeline_mode = #tpu.pipeline_mode<synchronous>, transform_indices = @transform_1, window_bounds = array<i64: 1, 256>}, {transform_indices = @transform_2, window_bounds = array<i64: 16, 256>}]} {
    %c0 = arith.constant 0 : index
    %c0_0 = arith.constant 0 : index
    %0 = vector.load %arg1[%c0, %c0_0] : memref<16x256xf32, #tpu.memory_space<vmem>>, vector<16x256xf32>
    %1 = arith.mulf %0, %0 : vector<16x256xf32>
    %cst = arith.constant dense<0.000000e+00> : vector<16xf32>
    %2 = vector.multi_reduction <add>, %1, %cst [1] : vector<16x256xf32> to vector<16xf32>
    %3 = vector.shape_cast %2 : vector<16xf32> to vector<16x1xf32>
    %cst_1 = arith.constant 3.906250e-03 : f32
    %4 = vector.broadcast %cst_1 : f32 to vector<16x1xf32>
    %5 = arith.mulf %3, %4 : vector<16x1xf32>
    %cst_2 = arith.constant 9.99999997E-7 : f32
    %6 = vector.broadcast %cst_2 : f32 to vector<16x1xf32>
    %7 = arith.addf %5, %6 : vector<16x1xf32>
    %8 = math.rsqrt %7 : vector<16x1xf32>
    %9 = vector.broadcast %8 : vector<16x1xf32> to vector<16x256xf32>
    %10 = arith.mulf %0, %9 : vector<16x256xf32>
    %c0_3 = arith.constant 0 : index
    %c0_4 = arith.constant 0 : index
    %11 = vector.load %arg2[%c0_3, %c0_4] : memref<1x256xf32, #tpu.memory_space<vmem>>, vector<1x256xf32>
    %12 = vector.broadcast %11 : vector<1x256xf32> to vector<16x256xf32>
    %13 = arith.mulf %12, %10 : vector<16x256xf32>
    %c0_5 = arith.constant 0 : index
    %c0_6 = arith.constant 0 : index
    %14 = vector.load %arg3[%c0_5, %c0_6] : memref<16x256xf32, #tpu.memory_space<vmem>>, vector<16x256xf32>
    tpu.vector_store %arg3[%c0_5, %c0_6], %13 {strides = array<i32>} : memref<16x256xf32, #tpu.memory_space<vmem>>, vector<16x256xf32>,
    return
  }
  func.func @transform_0(%arg0: i32) -> (i32, i32) {
    %c0_i32 = arith.constant 0 : i32
    %c0_i32_0 = arith.constant 0 : i32
    return %arg0, %c0_i32 : i32, i32
  }
  func.func @transform_1(%arg0: i32) -> (i32, i32) {
    %c0_i32 = arith.constant 0 : i32
    %c0_i32_0 = arith.constant 0 : i32
    %c0_i32_1 = arith.constant 0 : i32
    return %c0_i32, %c0_i32_0 : i32, i32
  }
  func.func @transform_2(%arg0: i32) -> (i32, i32) {
    %c0_i32 = arith.constant 0 : i32
    %c0_i32_0 = arith.constant 0 : i32
    return %arg0, %c0_i32 : i32, i32
  }
}

</mosaic_0001>

<llo_original>
// kernel: tpu_custom_call.1
$region0: #{tpu_custom_call.1}
  #allocation0 [shape = 'u32[]', space=smem, size = 0x4, offset = 0x4, fixed_abs, tag = 'smem constant byte address 0x4 - core index']
  #allocation1 [shape = 'u32[144,128]{1,0:T(1,128)}', space=vmem, size = 0x12000, scoped, tag = 'internal scratch']
  %s0 = inlined_call_operand.hbm [shape: f32[16,256], index: 0, kind: input, shape index: {}]
  %s1 = inlined_call_operand.vmem [shape: f32[1,256], index: 1, kind: input, shape index: {}]
  %s2 = inlined_call_operand.hbm [shape: f32[16,256], index: 2, kind: output, shape index: {}]
  %s3 = sld [smem:[#allocation0]]
  $region22: #{tpu_custom_call.1} parent=0
    _
  %s5 = ssub.s32 1, %s3
  %s6 = scalar_select 0, %s5, %s3
  $region1: #{tpu_custom_call.1} parent=0
    #allocation2 [shape = 'u8[16384]{0}', space=vmem, size = 0x4000, scoped, tag = 'input window, operand 0, single buffered']
    #allocation3 [shape = 's32[1]{0}', space=sflag, size = 0x4, scoped, tag = 'scoped memory for tpu_custom_call.1']
    #allocation4 [shape = 's32[1]{0}', space=sflag, size = 0x4, scoped, tag = 'scoped memory for tpu_custom_call.1']
    #allocation5 [shape = 'u8[16384]{0}', space=vmem, size = 0x4000, scoped, tag = 'output window, operand 0, single buffered']
    %7 = vsyncpa [#allocation3], 0
    %8 = vsyncpa [#allocation4], 0
    // Predicated region
    $region2: #{tpu_custom_call.1} parent=1 // pred_check
      _
    $region3: #{tpu_custom_call.1} parent=1 // pred_check_branch
      %10 = sbr.rel (0) target = $region5
    $region4: #{tpu_custom_call.1} parent=1 // pred_region
      %s12 = ssub.s32 512, 512
      %13 = vsyncadd [#allocation3], %s12
      %s14 = sshll.u32 [#allocation2], 4
      %s15 = int_to_ptr.vmem [resolvable:$true] %s14
      %20 = dma.hbm_to_vmem [thread:$0]  %s0, 512, %s15, [#allocation3], 256, 256, 16
    $region5: #{tpu_custom_call.1} parent=1 // pred_fallthru
      _
    // Predicated region
    $region6: #{tpu_custom_call.1} parent=1 // pred_check
      _
    $region7: #{tpu_custom_call.1} parent=1 // pred_check_branch
      %22 = sbr.rel (0) target = $region9
    $region8: #{tpu_custom_call.1} parent=1 // pred_region
      _
    $region9: #{tpu_custom_call.1} parent=1 // pred_fallthru
      _
    // Predicated region
    $region10: #{tpu_custom_call.1} parent=1 // pred_check
      _
    $region11: #{tpu_custom_call.1} parent=1 // pred_check_branch
      %24 = sbr.rel (0) target = $region13
    $region12: #{tpu_custom_call.1} parent=1 // pred_region
      %25 = dma.done [#allocation3], 512
    $region13: #{tpu_custom_call.1} parent=1 // pred_fallthru
      _
    %v26 = vld [vmem:[#allocation2] sm:$0xff]
    %v27 = vld [vmem:[#allocation2 + $0x8] sm:$0xff]
    %v28 = vld [vmem:[#allocation2 + $0x10] sm:$0xff]
    %v29 = vld [vmem:[#allocation2 + $0x18] sm:$0xff]
    %v30 = vmul.f32 %v26, %v26
    %v31 = vmul.f32 %v27, %v27
    %v32 = vmul.f32 %v28, %v28
    %v33 = vmul.f32 %v29, %v29
    %v34 = vadd.f32 %v30, %v31
    %35 = vadd.xlane.f32.xlu0 %v34
    %v36 = vpop.xlane.xlu0 %35
    %v37 = vadd.f32 %v32, %v33
    %38 = vadd.xlane.f32.xlu0 %v37
    %v39 = vpop.xlane.xlu0 %38
    %v40 = vmul.f32 %v36, 0.00390625
    %v41 = vmul.f32 %v39, 0.00390625
    %v42 = vadd.f32 %v40, 1e-06
    %v43 = vadd.f32 %v41, 1e-06
    %v44 = vrsqrt.pop %v42
    %v45 = vrsqrt.pop %v43
    %v46 = vmul.f32 %v26, %v44
    %v47 = vmul.f32 %v27, %v44
    %v48 = vmul.f32 %v28, %v45
    %v49 = vmul.f32 %v29, %v45
    %v50 = vld [vmem:[%s1] sm:$0x3]
    %v52 = vlaneseq
    %v53 = vshrl.u32 %v52, 7
    %v54 = vsub.s32 0, %v53
    %v55 = vrot.slane %v50, %v54
    %v56 = vlaneseq
    %v57 = vshrl.u32 %v56, 7
    %v58 = vsub.s32 1, %v57
    %v59 = vrot.slane %v50, %v58
    %v62 = vmul.f32 %v55, %v46
    %v63 = vmul.f32 %v59, %v47
    %v64 = vmul.f32 %v55, %v48
    %v65 = vmul.f32 %v59, %v49
    %66 = vst [vmem:[#allocation5] sm:$0xff] %v62
    %67 = vst [vmem:[#allocation5 + $0x8] sm:$0xff] %v63
    %68 = vst [vmem:[#allocation5 + $0x10] sm:$0xff] %v64
    %69 = vst [vmem:[#allocation5 + $0x18] sm:$0xff] %v65
    // Predicated region
    $region14: #{tpu_custom_call.1} parent=1 // pred_check
      _
    $region15: #{tpu_custom_call.1} parent=1 // pred_check_branch
      %71 = sbr.rel (0) target = $region17
    $region16: #{tpu_custom_call.1} parent=1 // pred_region
      %s73 = ssub.s32 512, 512
      %74 = vsyncadd [#allocation4], %s73
      %s75 = sshll.u32 [#allocation5], 4
      %s76 = int_to_ptr.vmem [resolvable:$true] %s75
      %81 = dma.vmem_to_hbm [thread:$0]  %s76, 512, %s2, [#allocation4], 256, 256, 16
    $region17: #{tpu_custom_call.1} parent=1 // pred_fallthru
      _
    // Predicated region
    $region18: #{tpu_custom_call.1} parent=1 // pred_check
      _
    $region19: #{tpu_custom_call.1} parent=1 // pred_check_branch
      %83 = sbr.rel (0) target = $region21
    $region20: #{tpu_custom_call.1} parent=1 // pred_region
      %84 = dma.done [#allocation4], 512
    $region21: #{tpu_custom_call.1} parent=1 // pred_fallthru
      _
    %85 = vsyncpa [#allocation3], 1
    %86 = vsyncpa [#allocation4], 1

</llo_original>
